<compile_context>
chip_gen: v5e
topology: v5e:2x2
jax: 0.10.0
libtpu: 0.0.40
codegen_flags: <defaults>
</compile_context>

<pallas_src>
import jax
import jax.numpy as jnp
import numpy as np
from jax.experimental import pallas as pl
from jax.experimental.pallas import tpu as pltpu


def _round_up(x, m):
    return ((x + m - 1) // m) * m


def net_basic_kernel(x_ref, w_ref, a_ref, v_ref, o_ref):
    # x: (TILE_N, F), w: (F, W), a: (1, W), v: (1, W)  [v is v_k transposed]
    x = x_ref[...]
    w = w_ref[...]
    a = a_ref[...]
    v = v_ref[...]

    # z = x @ w_k + a_k   (MXU, f32 accumulation)
    z = jnp.dot(x, w, preferred_element_type=jnp.float32) + a
    # Vanilla mode -> ReLU activation (VPU)
    h = jnp.maximum(z, 0.0)
    # y = h @ v_k  done as elementwise multiply + lane reduction (VPU + XLU),
    # avoiding a 1-column MXU push/pop per tile.
    y = jnp.sum(h * v, axis=-1, keepdims=True)

    o_ref[...] = y.astype(o_ref.dtype)


def net_basic_forward(x, w_k, a_k, v_k, tile_n=2048):
    """Pallas implementation of net_basic.forward (mode='Vanilla')."""
    N, F = x.shape
    F2, W = w_k.shape
    assert F == F2 and v_k.shape == (W, 1) and a_k.shape == (W,)

    # Row vectors for bias and for the VPU-reduction form of the second matmul.
    a2 = a_k.reshape(1, W).astype(x.dtype)
    v2 = v_k.reshape(1, W).astype(x.dtype)  # (W,1) -> (1,W) row

    # Tile the sample dimension.  Sublane constraint: tile must be a multiple
    # of 8 (or equal the full dim); pad N up to a multiple of the tile.
    tile_n = max(8, min(int(tile_n), _round_up(N, 8)))
    tile_n = _round_up(tile_n, 8)
    n_pad = _round_up(N, tile_n)
    if n_pad != N:
        x = jnp.pad(x, ((0, n_pad - N), (0, 0)))
    grid = (n_pad // tile_n,)

    cost = pl.CostEstimate(
        flops=2 * N * F * W + 2 * N * W,
        transcendentals=0,
        bytes_accessed=N * F * 4 + F * W * 4 + W * 4 + W * 4 + N * 4,
    )

    y_pad = pl.pallas_call(
        net_basic_kernel,
        out_shape=jax.ShapeDtypeStruct((n_pad, 1), x.dtype),
        grid_spec=pl.GridSpec(
            grid=grid,
            in_specs=[
                # x streams tile-by-tile over the row dimension.
                pl.BlockSpec((tile_n, F), lambda i: (i, 0)),
                # Weights / bias / v are tiny: constant block index -> DMA'd
                # once, VMEM-resident across all grid steps.
                pl.BlockSpec((F, W), lambda i: (0, 0)),
                pl.BlockSpec((1, W), lambda i: (0, 0)),
                pl.BlockSpec((1, W), lambda i: (0, 0)),
            ],
            out_specs=pl.BlockSpec((tile_n, 1), lambda i: (i, 0)),
        ),
        compiler_params=pltpu.CompilerParams(
            # Rows are independent: parallel lets v7x's two TensorCores split
            # the grid; no cost on single-TC v5e/v6e.
            dimension_semantics=("parallel",),
        ),
        cost_estimate=cost,
    )(x, w_k, a2, v2)

    return y_pad[:N]


def init_params(key, in_features, width):
    """Deterministic init mirroring net_basic.__init__ parameter shapes."""
    k_w, k_a, k_v = jax.random.split(key, 3)
    # nu is a parameter in the module but unused in the Vanilla forward().
    nu = jnp.ones(())  # TODO(synk): nu is not used in the Vanilla forward pass
    w_k = jax.random.normal(k_w, (in_features, width), jnp.float32) / np.sqrt(in_features)
    a_k = jax.random.normal(k_a, (width,), jnp.float32) / np.sqrt(in_features)
    v_k = jax.random.normal(k_v, (width, 1), jnp.float32) / np.sqrt(width)
    return nu, w_k, a_k, v_k


def reference_forward(x, w_k, a_k, v_k):
    return jnp.maximum(x @ w_k + a_k, 0.0) @ v_k


if __name__ == "__main__":
    key = jax.random.PRNGKey(0)
    k_x, k_p, k_x2 = jax.random.split(key, 3)

    # Small shapes consistent with forward: x is (num_samples, in_features).
    num_samples = 8
    in_features = 4
    width = 32

    x = jax.random.normal(k_x, (num_samples, in_features), jnp.float32)
    _, w_k, a_k, v_k = init_params(k_p, in_features, width)

    y = net_basic_forward(x, w_k, a_k, v_k)
    y = jax.block_until_ready(y)
    y_ref = reference_forward(x, w_k, a_k, v_k)
    assert y.shape == (num_samples, 1)
    np.testing.assert_allclose(np.asarray(y), np.asarray(y_ref), rtol=1e-5, atol=1e-5)

    # Second check: exercise the multi-step tiled grid + padding path.
    n_big = 300
    x2 = jax.random.normal(k_x2, (n_big, in_features), jnp.float32)
    y2 = net_basic_forward(x2, w_k, a_k, v_k, tile_n=64)
    y2 = jax.block_until_ready(y2)
    y2_ref = reference_forward(x2, w_k, a_k, v_k)
    assert y2.shape == (n_big, 1)
    np.testing.assert_allclose(np.asarray(y2), np.asarray(y2_ref), rtol=1e-5, atol=1e-5)

    print("KERNEL_OK")
</pallas_src>

<mosaic_0001>
module attributes {stable_mosaic.version = 11 : i64} {
  func.func @net_basic_kernel(%arg0: i32, %arg1: memref<8x4xf32, #tpu.memory_space<vmem>>, %arg2: memref<4x32xf32, #tpu.memory_space<vmem>>, %arg3: memref<1x32xf32, #tpu.memory_space<vmem>>, %arg4: memref<1x32xf32, #tpu.memory_space<vmem>>, %arg5: memref<8x1xf32, #tpu.memory_space<vmem>>) attributes {dimension_semantics = [#tpu.dimension_semantics<parallel>], iteration_bounds = array<i64: 1>, scalar_prefetch = 0 : i64, scratch_operands = 0 : i64, tpu.core_type = #tpu.core_type<tc>, window_params = [{transform_indices = @transform_0, window_bounds = array<i64: 8, 4>}, {pipeline_mode = #tpu.pipeline_mode<synchronous>, transform_indices = @transform_1, window_bounds = array<i64: 4, 32>}, {pipeline_mode = #tpu.pipeline_mode<synchronous>, transform_indices = @transform_2, window_bounds = array<i64: 1, 32>}, {pipeline_mode = #tpu.pipeline_mode<synchronous>, transform_indices = @transform_3, window_bounds = array<i64: 1, 32>}, {transform_indices = @transform_4, window_bounds = array<i64: 8, 1>}]} {
    %c0 = arith.constant 0 : index
    %c0_0 = arith.constant 0 : index
    %0 = vector.load %arg1[%c0, %c0_0] : memref<8x4xf32, #tpu.memory_space<vmem>>, vector<8x4xf32>
    %c0_1 = arith.constant 0 : index
    %c0_2 = arith.constant 0 : index
    %1 = vector.load %arg2[%c0_1, %c0_2] : memref<4x32xf32, #tpu.memory_space<vmem>>, vector<4x32xf32>
    %c0_3 = arith.constant 0 : index
    %c0_4 = arith.constant 0 : index
    %2 = vector.load %arg3[%c0_3, %c0_4] : memref<1x32xf32, #tpu.memory_space<vmem>>, vector<1x32xf32>
    %c0_5 = arith.constant 0 : index
    %c0_6 = arith.constant 0 : index
    %3 = vector.load %arg4[%c0_5, %c0_6] : memref<1x32xf32, #tpu.memory_space<vmem>>, vector<1x32xf32>
    %cst = arith.constant dense<0.000000e+00> : vector<8x32xf32>
    %4 = tpu.matmul %0, %1, %cst {dimension_numbers = #tpu.dot_dimension_numbers<[1], [0], [0], [1], [0, 0, 1, 1], [], []>} : vector<8x4xf32>, vector<4x32xf32>, vector<8x32xf32> -> vector<8x32xf32>
    %5 = vector.broadcast %2 : vector<1x32xf32> to vector<8x32xf32>
    %6 = arith.addf %4, %5 : vector<8x32xf32>
    %cst_7 = arith.constant 0.000000e+00 : f32
    %7 = vector.broadcast %cst_7 : f32 to vector<8x32xf32>
    %8 = arith.maximumf %6, %7 : vector<8x32xf32>
    %9 = vector.broadcast %3 : vector<1x32xf32> to vector<8x32xf32>
    %10 = arith.mulf %8, %9 : vector<8x32xf32>
    %cst_8 = arith.constant dense<0.000000e+00> : vector<8xf32>
    %11 = vector.multi_reduction <add>, %10, %cst_8 [1] : vector<8x32xf32> to vector<8xf32>
    %12 = vector.shape_cast %11 : vector<8xf32> to vector<8x1xf32>
    %c0_9 = arith.constant 0 : index
    %c0_10 = arith.constant 0 : index
    %13 = vector.load %arg5[%c0_9, %c0_10] : memref<8x1xf32, #tpu.memory_space<vmem>>, vector<8x1xf32>
    tpu.vector_store %arg5[%c0_9, %c0_10], %12 {strides = array<i32>} : memref<8x1xf32, #tpu.memory_space<vmem>>, vector<8x1xf32>,
    return
  }
  func.func @transform_0(%arg0: i32) -> (i32, i32) {
    %c0_i32 = arith.constant 0 : i32
    %c0_i32_0 = arith.constant 0 : i32
    return %arg0, %c0_i32 : i32, i32
  }
  func.func @transform_1(%arg0: i32) -> (i32, i32) {
    %c0_i32 = arith.constant 0 : i32
    %c0_i32_0 = arith.constant 0 : i32
    %c0_i32_1 = arith.constant 0 : i32
    return %c0_i32, %c0_i32_0 : i32, i32
  }
  func.func @transform_2(%arg0: i32) -> (i32, i32) {
    %c0_i32 = arith.constant 0 : i32
    %c0_i32_0 = arith.constant 0 : i32
    %c0_i32_1 = arith.constant 0 : i32
    return %c0_i32, %c0_i32_0 : i32, i32
  }
  func.func @transform_3(%arg0: i32) -> (i32, i32) {
    %c0_i32 = arith.constant 0 : i32
    %c0_i32_0 = arith.constant 0 : i32
    %c0_i32_1 = arith.constant 0 : i32
    return %c0_i32, %c0_i32_0 : i32, i32
  }
  func.func @transform_4(%arg0: i32) -> (i32, i32) {
    %c0_i32 = arith.constant 0 : i32
    %c0_i32_0 = arith.constant 0 : i32
    return %arg0, %c0_i32 : i32, i32
  }
}

</mosaic_0001>

<llo_original>
// kernel: tpu_custom_call.1
$region0: #{tpu_custom_call.1}
  #allocation0 [shape = 'u32[]', space=smem, size = 0x4, offset = 0x4, fixed_abs, tag = 'smem constant byte address 0x4 - core index']
  #allocation1 [shape = 'u32[72,128]{1,0:T(1,128)}', space=vmem, size = 0x9000, scoped, tag = 'internal scratch']
  %s0 = inlined_call_operand.vmem [shape: f32[8,4], index: 0, kind: input, shape index: {}]
  %s1 = inlined_call_operand.vmem [shape: f32[4,32], index: 1, kind: input, shape index: {}]
  %s2 = inlined_call_operand.vmem [shape: f32[1,32], index: 2, kind: input, shape index: {}]
  %s3 = inlined_call_operand.vmem [shape: f32[1,32], index: 3, kind: input, shape index: {}]
  %s4 = inlined_call_operand.vmem [shape: f32[8,1], index: 4, kind: output, shape index: {}]
  %s5 = sld [smem:[#allocation0]]
  $region26: #{tpu_custom_call.1} parent=0
    _
  %s7 = ssub.s32 1, %s5
  %s8 = scalar_select 0, %s7, %s5
  // Predicated region
  $region2: #{tpu_custom_call.1} parent=0 // pred_check
    _
  $region3: #{tpu_custom_call.1} parent=0 // pred_check_branch
    %10 = sbr.rel (0) target = $region5
  $region4: #{tpu_custom_call.1} parent=0 // pred_region
    _
  $region5: #{tpu_custom_call.1} parent=0 // pred_fallthru
    _
  // Predicated region
  $region6: #{tpu_custom_call.1} parent=0 // pred_check
    _
  $region7: #{tpu_custom_call.1} parent=0 // pred_check_branch
    %12 = sbr.rel (0) target = $region9
  $region8: #{tpu_custom_call.1} parent=0 // pred_region
    _
  $region9: #{tpu_custom_call.1} parent=0 // pred_fallthru
    _
  // Predicated region
  $region10: #{tpu_custom_call.1} parent=0 // pred_check
    _
  $region11: #{tpu_custom_call.1} parent=0 // pred_check_branch
    %14 = sbr.rel (0) target = $region13
  $region12: #{tpu_custom_call.1} parent=0 // pred_region
    _
  $region13: #{tpu_custom_call.1} parent=0 // pred_fallthru
    _
  // Predicated region
  $region14: #{tpu_custom_call.1} parent=0 // pred_check
    _
  $region15: #{tpu_custom_call.1} parent=0 // pred_check_branch
    %16 = sbr.rel (0) target = $region17
  $region16: #{tpu_custom_call.1} parent=0 // pred_region
    _
  $region17: #{tpu_custom_call.1} parent=0 // pred_fallthru
    _
  %v17 = vld [vmem:[%s0] sm:$0xff]
  %v18 = vld [vmem:[%s1] sm:$0xf]
  %v19 = vld [vmem:[%s2] sm:$0x1]
  %v20 = vld [vmem:[%s3] sm:$0x1]
  %v22 = vperm.slane %v19, 0
  %vm24 = vcmask 31744
  %v26 = vsel %vm24, %v17, 0
  %vm28 = vcmask 1043456
  %v30 = vsel %vm28, %v18, 0
  %32 = vmatpush.msra.mxu0 0.0
  %33 = vmatpush.msra.mxu0 0.0
  %34 = vmatpush.msra.mxu0 0.0
  %35 = vmatpush.msra.mxu0 0.0
  %36 = vmatpush.msra.mxu0 0.0
  %37 = vmatpush.msra.mxu0 0.0
  %38 = vmatpush.msra.mxu0 0.0
  %39 = vmatpush.msra.mxu0 0.0
  %40 = vmatpush.msra.mxu0 0.0
  %41 = vmatpush.msra.mxu0 0.0
  %42 = vmatpush.msra.mxu0 0.0
  %43 = vmatpush.msra.mxu0 0.0
  %44 = vmatpush.msra.mxu0 0.0
  %45 = vmatpush.msra.mxu0 0.0
  %46 = vmatpush.msra.mxu0 0.0
  %47 = vmatpush.msra.mxu0 %v30
  %48 = vmatmul.f32.gmra.mxu0 %v26
  %v49 = vpop.f32.mrf.mxu0
  %v50 = vadd.f32 %v22, %v49
  %51 = vdwg.mxu0
  %v52 = vmax.f32 %v50, 0.0
  %v54 = vperm.slane %v20, 0
  %v56 = vmul.f32 %v52, %v54
  %vm57 = vcmask 261120
  %v58 = vsel %vm57, %v56, 0.0
  %59 = vadd.xlane.f32.xlu0 %v58
  %v60 = vpop.xlane.xlu0 %59
  %vm61 = vcmask 7168
  %62 = vst.msk [vmem:[%s4] sm:$0xff] %vm61, %v60
  // Predicated region
  $region18: #{tpu_custom_call.1} parent=0 // pred_check
    _
  $region19: #{tpu_custom_call.1} parent=0 // pred_check_branch
    %64 = sbr.rel (0) target = $region21
  $region20: #{tpu_custom_call.1} parent=0 // pred_region
    _
  $region21: #{tpu_custom_call.1} parent=0 // pred_fallthru
    _
  // Predicated region
  $region22: #{tpu_custom_call.1} parent=0 // pred_check
    _
  $region23: #{tpu_custom_call.1} parent=0 // pred_check_branch
    %66 = sbr.rel (0) target = $region25
  $region24: #{tpu_custom_call.1} parent=0 // pred_region
    _
  $region25: #{tpu_custom_call.1} parent=0 // pred_fallthru
    _

</llo_original>
